<compile_context>
chip_gen: v6e
topology: v6e:2x2x1
jax: 0.10.0
libtpu: 0.0.40
codegen_flags: <defaults>
</compile_context>

<pallas_src>
import jax
import jax.numpy as jnp
from jax import lax
from jax.experimental import pallas as pl
from jax.experimental.pallas import tpu as pltpu

BN_EPS = 1e-5
LANE = 128                       # channel padding granularity (lane width)
VMEM_LIMIT = 32 * 1024 * 1024    # scoped-VMEM budget safe on v5e / v6e / v7x


def _round_up(x, m):
    return (x + m - 1) // m * m


# ------------------------------ Pallas kernels ------------------------------ #

def _conv_stats_kernel(p_ref, w_ref, y_ref, ssum_ref, ssq_ref):
    """One M-tile of conv-as-GEMM + per-tile BatchNorm partial statistics.

    p_ref   : (TM, K)  bf16 im2col patches (taps packed into the lane/K axis)
    w_ref   : (K, Cp)  bf16 weights (Cout zero-padded to Cp, multiple of 128)
    y_ref   : (TM, Cp) f32  conv output tile
    ssum_ref/ssq_ref : (1, 1, Cp) f32 per-tile sum / sum-of-squares partials
    """
    acc = jnp.dot(p_ref[...], w_ref[...], preferred_element_type=jnp.float32)
    y_ref[...] = acc
    ssum_ref[...] = jnp.sum(acc, axis=0, keepdims=True).reshape(ssum_ref.shape)
    ssq_ref[...] = jnp.sum(acc * acc, axis=0, keepdims=True).reshape(ssq_ref.shape)


def _bn_relu_kernel(y_ref, s_ref, b_ref, o_ref):
    """o = relu(y * scale + bias); scale/bias fold BN batch stats + gamma/beta."""
    o_ref[...] = jnp.maximum(
        y_ref[...] * s_ref[...] + b_ref[...], 0.0).astype(o_ref.dtype)


def _bn2_add_relu_kernel(yl_ref, sl_ref, bl_ref, yr_ref, sr_ref, br_ref, o_ref):
    """o = relu((yl*sl+bl) + (yr*sr+br)) : BN2(left) + shortcut (BN_sc or id)."""
    left = yl_ref[...] * sl_ref[...] + bl_ref[...]
    right = yr_ref[...].astype(jnp.float32) * sr_ref[...] + br_ref[...]
    o_ref[...] = jnp.maximum(left + right, 0.0).astype(o_ref.dtype)


# ------------------------------ kernel wrappers ------------------------------ #

def _conv_stats(patches, w, tm):
    """(Mpad, K) bf16 @ (K, Cp) bf16 -> (Mpad, Cp) f32 + per-channel sum/sumsq."""
    mpad, k = patches.shape
    cp = w.shape[1]
    nt = mpad // tm
    cost = pl.CostEstimate(
        flops=2 * mpad * k * cp,
        transcendentals=0,
        bytes_accessed=mpad * k * 2 + k * cp * 2 + mpad * cp * 4 + 2 * nt * cp * 4)
    y, ssum, ssq = pl.pallas_call(
        _conv_stats_kernel,
        out_shape=(jax.ShapeDtypeStruct((mpad, cp), jnp.float32),
                   jax.ShapeDtypeStruct((nt, 1, cp), jnp.float32),
                   jax.ShapeDtypeStruct((nt, 1, cp), jnp.float32)),
        grid_spec=pltpu.PrefetchScalarGridSpec(
            num_scalar_prefetch=0,
            grid=(nt,),
            in_specs=[pl.BlockSpec((tm, k), lambda i: (i, 0)),
                      pl.BlockSpec((k, cp), lambda i: (0, 0))],
            out_specs=[pl.BlockSpec((tm, cp), lambda i: (i, 0)),
                       pl.BlockSpec((1, 1, cp), lambda i: (i, 0, 0)),
                       pl.BlockSpec((1, 1, cp), lambda i: (i, 0, 0))]),
        compiler_params=pltpu.CompilerParams(
            dimension_semantics=("parallel",),
            vmem_limit_bytes=VMEM_LIMIT),
        cost_estimate=cost,
    )(patches, w)
    # reduce the (tiny) per-tile partials in plain JAX -> (Cp,) each
    return y, jnp.sum(ssum[:, 0, :], axis=0), jnp.sum(ssq[:, 0, :], axis=0)


def _bn_relu(y, scale, bias, tm, out_dtype):
    mpad, cp = y.shape
    nt = mpad // tm
    row = pl.BlockSpec((tm, cp), lambda i: (i, 0))
    vec = pl.BlockSpec((1, cp), lambda i: (0, 0))
    return pl.pallas_call(
        _bn_relu_kernel,
        out_shape=jax.ShapeDtypeStruct((mpad, cp), out_dtype),
        grid_spec=pltpu.PrefetchScalarGridSpec(
            num_scalar_prefetch=0, grid=(nt,),
            in_specs=[row, vec, vec],
            out_specs=pl.BlockSpec((tm, cp), lambda i: (i, 0))),
        compiler_params=pltpu.CompilerParams(
            dimension_semantics=("parallel",),
            vmem_limit_bytes=VMEM_LIMIT),
    )(y, scale, bias)


def _bn2_add_relu(yl, sl, bl, yr, sr, br, tm):
    mpad, cp = yl.shape
    nt = mpad // tm
    row = pl.BlockSpec((tm, cp), lambda i: (i, 0))
    vec = pl.BlockSpec((1, cp), lambda i: (0, 0))
    return pl.pallas_call(
        _bn2_add_relu_kernel,
        out_shape=jax.ShapeDtypeStruct((mpad, cp), jnp.float32),
        grid_spec=pltpu.PrefetchScalarGridSpec(
            num_scalar_prefetch=0, grid=(nt,),
            in_specs=[row, vec, vec, row, vec, vec],
            out_specs=pl.BlockSpec((tm, cp), lambda i: (i, 0))),
        compiler_params=pltpu.CompilerParams(
            dimension_semantics=("parallel",),
            vmem_limit_bytes=VMEM_LIMIT),
    )(yl, sl, bl, yr, sr, br)


# --------------------------------- JAX glue --------------------------------- #

def _im2col_3x3(x_nhwc, stride):
    """(N,H,W,C) -> (N*Ho*Wo, 9*C): 3x3/pad=1 taps packed into the lane axis."""
    n, h, w, c = x_nhwc.shape
    xp = jnp.pad(x_nhwc, ((0, 0), (1, 1), (1, 1), (0, 0)))
    ho = (h - 1) // stride + 1
    wo = (w - 1) // stride + 1
    taps = []
    for kh in range(3):
        for kw in range(3):
            taps.append(xp[:, kh:kh + stride * (ho - 1) + 1:stride,
                           kw:kw + stride * (wo - 1) + 1:stride, :])
    pat = jnp.stack(taps, axis=3).reshape(n * ho * wo, 9 * c)   # tap-major, C-minor
    return pat, ho, wo


def _fold_bn(ssum, ssq, m_true, gamma, beta, cp):
    """Fold batch stats + gamma/beta into per-channel (scale, bias), f32.

    Variance uses E[x^2] - mean^2 on f32 sums (clamped >= 0). Conv activations
    here are near-zero-mean so cancellation is negligible; a fully centered
    form would need one more pass over the conv output.
    """
    cout = gamma.shape[-1]
    mean = ssum / m_true
    var = jnp.maximum(ssq / m_true - mean * mean, 0.0)
    g = jnp.pad(gamma.reshape(-1).astype(jnp.float32), (0, cp - cout))
    b = jnp.pad(beta.reshape(-1).astype(jnp.float32), (0, cp - cout))
    scale = g * lax.rsqrt(var + BN_EPS)
    bias = b - mean * scale
    return scale.reshape(1, cp), bias.reshape(1, cp)


def _pad_rows(a, mpad):
    return jnp.pad(a, ((0, mpad - a.shape[0]), (0, 0)))


def init_params(key, cin, cout, stride):
    ks = jax.random.split(key, 9)
    p = {
        "w1": 0.1 * jax.random.normal(ks[0], (3, 3, cin, cout), jnp.float32),   # HWIO
        "g1": 1.0 + 0.1 * jax.random.normal(ks[1], (cout,), jnp.float32),
        "b1": 0.1 * jax.random.normal(ks[2], (cout,), jnp.float32),
        "w2": 0.1 * jax.random.normal(ks[3], (3, 3, cout, cout), jnp.float32),
        "g2": 1.0 + 0.1 * jax.random.normal(ks[4], (cout,), jnp.float32),
        "b2": 0.1 * jax.random.normal(ks[5], (cout,), jnp.float32),
    }
    if stride != 1 or cin != cout:
        p["wsc"] = 0.1 * jax.random.normal(ks[6], (cin, cout), jnp.float32)
        p["gsc"] = 1.0 + 0.1 * jax.random.normal(ks[7], (cout,), jnp.float32)
        p["bsc"] = 0.1 * jax.random.normal(ks[8], (cout,), jnp.float32)
    return p


def res_block_forward(x_nchw, params, stride, tm_max=512):
    """Res_Block forward. x_nchw: (N, Cin, H, W) f32 -> (N, Cout, Ho, Wo) f32."""
    x = jnp.transpose(x_nchw, (0, 2, 3, 1)).astype(jnp.float32)   # NCHW -> NHWC
    n, h, w, cin = x.shape
    cout = params["w1"].shape[-1]
    cp = _round_up(cout, LANE)                                    # lane-dense channels

    # ---- conv1 (3x3, stride) + BN1 + ReLU --------------------------------- #
    # TODO(synk): build the 3x3 patch tiles inside the kernel (halo-aware DMA)
    # instead of materializing the 9x im2col in HBM.
    patches1, ho, wo = _im2col_3x3(x, stride)
    m = n * ho * wo
    tm = min(tm_max, _round_up(m, 16))      # multiple of 16 for bf16 sublane packing
    mpad = _round_up(m, tm)

    patches1 = _pad_rows(patches1, mpad).astype(jnp.bfloat16)
    w1 = jnp.pad(params["w1"].reshape(9 * cin, cout),
                 ((0, 0), (0, cp - cout))).astype(jnp.bfloat16)
    y1c, s1, q1 = _conv_stats(patches1, w1, tm)
    scale1, bias1 = _fold_bn(s1, q1, m, params["g1"], params["b1"], cp)
    y1 = _bn_relu(y1c, scale1, bias1, tm, jnp.bfloat16)           # bf16 round trip

    # ---- conv2 (3x3, stride 1) + BN2 -------------------------------------- #
    y1_nhwc = y1[:m, :cout].reshape(n, ho, wo, cout)
    patches2, _, _ = _im2col_3x3(y1_nhwc, 1)
    patches2 = _pad_rows(patches2, mpad)                          # already bf16
    w2 = jnp.pad(params["w2"].reshape(9 * cout, cout),
                 ((0, 0), (0, cp - cout))).astype(jnp.bfloat16)
    y2c, s2, q2 = _conv_stats(patches2, w2, tm)
    scale2, bias2 = _fold_bn(s2, q2, m, params["g2"], params["b2"], cp)

    # ---- shortcut ---------------------------------------------------------- #
    if "wsc" in params:                                           # projection
        xsc = _pad_rows(x[:, ::stride, ::stride, :].reshape(m, cin),
                        mpad).astype(jnp.bfloat16)
        wsc = jnp.pad(params["wsc"],
                      ((0, 0), (0, cp - cout))).astype(jnp.bfloat16)
        yr, ssc, qsc = _conv_stats(xsc, wsc, tm)
        scale_r, bias_r = _fold_bn(ssc, qsc, m, params["gsc"], params["bsc"], cp)
    else:                                                         # identity (f32)
        yr = jnp.pad(x.reshape(m, cin), ((0, mpad - m), (0, cp - cout)))
        scale_r = jnp.ones((1, cp), jnp.float32)
        bias_r = jnp.zeros((1, cp), jnp.float32)

    out = _bn2_add_relu(y2c, scale2, bias2, yr, scale_r, bias_r, tm)
    out = out[:m, :cout].reshape(n, ho, wo, cout)
    return jnp.transpose(out, (0, 3, 1, 2))                       # back to NCHW


# ----------------------------- pure-JAX reference ---------------------------- #

def res_block_reference(x_nchw, params, stride):
    """Reference with the same bf16 conv-operand / f32-accumulate precision."""
    x = jnp.transpose(x_nchw, (0, 2, 3, 1)).astype(jnp.float32)

    def conv3x3(inp, w, s):
        return lax.conv_general_dilated(
            inp.astype(jnp.bfloat16), w.astype(jnp.bfloat16), (s, s),
            [(1, 1), (1, 1)], dimension_numbers=("NHWC", "HWIO", "NHWC"),
            preferred_element_type=jnp.float32)

    def bn(y, g, b):
        mean = jnp.mean(y, axis=(0, 1, 2), keepdims=True)
        var = jnp.mean((y - mean) ** 2, axis=(0, 1, 2), keepdims=True)
        return (y - mean) / jnp.sqrt(var + BN_EPS) * g.reshape(1, 1, 1, -1) \
            + b.reshape(1, 1, 1, -1)

    left = jnp.maximum(bn(conv3x3(x, params["w1"], stride),
                          params["g1"], params["b1"]), 0.0)
    left = bn(conv3x3(left.astype(jnp.bfloat16).astype(jnp.float32),
                      params["w2"], 1), params["g2"], params["b2"])
    if "wsc" in params:
        wsc = params["wsc"].reshape(1, 1, *params["wsc"].shape)
        right = lax.conv_general_dilated(
            x.astype(jnp.bfloat16), wsc.astype(jnp.bfloat16), (stride, stride),
            "VALID", dimension_numbers=("NHWC", "HWIO", "NHWC"),
            preferred_element_type=jnp.float32)
        right = bn(right, params["gsc"], params["bsc"])
    else:
        right = x
    return jnp.transpose(jnp.maximum(left + right, 0.0), (0, 3, 1, 2))


# ------------------------------------ main ----------------------------------- #

if __name__ == "__main__":
    key = jax.random.PRNGKey(0)
    kx, kp1, kp2 = jax.random.split(key, 3)

    x = jax.random.normal(kx, (2, 4, 16, 16), jnp.float32)        # NCHW like PyTorch

    # Case 1: projection shortcut (Cin=4 -> Cout=8, stride 2): single-tile grid.
    p_proj = init_params(kp1, 4, 8, stride=2)
    out_proj = res_block_forward(x, p_proj, stride=2)
    jax.block_until_ready(out_proj)
    ref_proj = res_block_reference(x, p_proj, stride=2)
    assert out_proj.shape == (2, 8, 8, 8)
    assert jnp.allclose(out_proj, ref_proj, atol=2e-3, rtol=2e-3), \
        float(jnp.max(jnp.abs(out_proj - ref_proj)))

    # Case 2: identity shortcut (Cin=Cout=4, stride 1) with a small 192-row tile
    # to exercise the multi-tile grid, row padding and cross-tile BN reduction.
    p_id = init_params(kp2, 4, 4, stride=1)
    out_id = res_block_forward(x, p_id, stride=1, tm_max=192)
    jax.block_until_ready(out_id)
    ref_id = res_block_reference(x, p_id, stride=1)
    assert out_id.shape == (2, 4, 16, 16)
    assert jnp.allclose(out_id, ref_id, atol=2e-3, rtol=2e-3), \
        float(jnp.max(jnp.abs(out_id - ref_id)))

    print("KERNEL_OK")
</pallas_src>

<mosaic_0001>
module attributes {stable_mosaic.version = 11 : i64} {
  func.func @_conv_stats_kernel(%arg0: i32, %arg1: memref<128x36xbf16, #tpu.memory_space<vmem>>, %arg2: memref<36x128xbf16, #tpu.memory_space<vmem>>, %arg3: memref<128x128xf32, #tpu.memory_space<vmem>>, %arg4: memref<1x1x128xf32, #tpu.memory_space<vmem>>, %arg5: memref<1x1x128xf32, #tpu.memory_space<vmem>>) attributes {dimension_semantics = [#tpu.dimension_semantics<parallel>], iteration_bounds = array<i64: 1>, scalar_prefetch = 0 : i64, scratch_operands = 0 : i64, tpu.core_type = #tpu.core_type<tc>, window_params = [{transform_indices = @transform_0, window_bounds = array<i64: 128, 36>}, {pipeline_mode = #tpu.pipeline_mode<synchronous>, transform_indices = @transform_1, window_bounds = array<i64: 36, 128>}, {transform_indices = @transform_2, window_bounds = array<i64: 128, 128>}, {transform_indices = @transform_3, window_bounds = array<i64: 1, 1, 128>}, {transform_indices = @transform_4, window_bounds = array<i64: 1, 1, 128>}]} {
    %c0 = arith.constant 0 : index
    %c0_0 = arith.constant 0 : index
    %0 = vector.load %arg1[%c0, %c0_0] : memref<128x36xbf16, #tpu.memory_space<vmem>>, vector<128x36xbf16>
    %c0_1 = arith.constant 0 : index
    %c0_2 = arith.constant 0 : index
    %1 = vector.load %arg2[%c0_1, %c0_2] : memref<36x128xbf16, #tpu.memory_space<vmem>>, vector<36x128xbf16>
    %cst = arith.constant dense<0.000000e+00> : vector<128x128xf32>
    %2 = tpu.matmul %0, %1, %cst {dimension_numbers = #tpu.dot_dimension_numbers<[1], [0], [0], [1], [0, 0, 1, 1], [], []>} : vector<128x36xbf16>, vector<36x128xbf16>, vector<128x128xf32> -> vector<128x128xf32>
    %c0_3 = arith.constant 0 : index
    %c0_4 = arith.constant 0 : index
    %3 = vector.load %arg3[%c0_3, %c0_4] : memref<128x128xf32, #tpu.memory_space<vmem>>, vector<128x128xf32>
    tpu.vector_store %arg3[%c0_3, %c0_4], %2 {strides = array<i32>} : memref<128x128xf32, #tpu.memory_space<vmem>>, vector<128x128xf32>,
    %cst_5 = arith.constant dense<0.000000e+00> : vector<128xf32>
    %4 = vector.multi_reduction <add>, %2, %cst_5 [0] : vector<128x128xf32> to vector<128xf32>
    %5 = vector.shape_cast %4 : vector<128xf32> to vector<1x128xf32>
    %6 = vector.shape_cast %5 : vector<1x128xf32> to vector<1x1x128xf32>
    %c0_6 = arith.constant 0 : index
    %c0_7 = arith.constant 0 : index
    %c0_8 = arith.constant 0 : index
    %7 = vector.load %arg4[%c0_6, %c0_7, %c0_8] : memref<1x1x128xf32, #tpu.memory_space<vmem>>, vector<1x1x128xf32>
    tpu.vector_store %arg4[%c0_6, %c0_7, %c0_8], %6 {strides = array<i32>} : memref<1x1x128xf32, #tpu.memory_space<vmem>>, vector<1x1x128xf32>,
    %8 = arith.mulf %2, %2 : vector<128x128xf32>
    %cst_9 = arith.constant dense<0.000000e+00> : vector<128xf32>
    %9 = vector.multi_reduction <add>, %8, %cst_9 [0] : vector<128x128xf32> to vector<128xf32>
    %10 = vector.shape_cast %9 : vector<128xf32> to vector<1x128xf32>
    %11 = vector.shape_cast %10 : vector<1x128xf32> to vector<1x1x128xf32>
    %c0_10 = arith.constant 0 : index
    %c0_11 = arith.constant 0 : index
    %c0_12 = arith.constant 0 : index
    %12 = vector.load %arg5[%c0_10, %c0_11, %c0_12] : memref<1x1x128xf32, #tpu.memory_space<vmem>>, vector<1x1x128xf32>
    tpu.vector_store %arg5[%c0_10, %c0_11, %c0_12], %11 {strides = array<i32>} : memref<1x1x128xf32, #tpu.memory_space<vmem>>, vector<1x1x128xf32>,
    return
  }
  func.func @transform_0(%arg0: i32) -> (i32, i32) {
    %c0_i32 = arith.constant 0 : i32
    %c0_i32_0 = arith.constant 0 : i32
    return %arg0, %c0_i32 : i32, i32
  }
  func.func @transform_1(%arg0: i32) -> (i32, i32) {
    %c0_i32 = arith.constant 0 : i32
    %c0_i32_0 = arith.constant 0 : i32
    %c0_i32_1 = arith.constant 0 : i32
    return %c0_i32, %c0_i32_0 : i32, i32
  }
  func.func @transform_2(%arg0: i32) -> (i32, i32) {
    %c0_i32 = arith.constant 0 : i32
    %c0_i32_0 = arith.constant 0 : i32
    return %arg0, %c0_i32 : i32, i32
  }
  func.func @transform_3(%arg0: i32) -> (i32, i32, i32) {
    %c0_i32 = arith.constant 0 : i32
    %c0_i32_0 = arith.constant 0 : i32
    %c0_i32_1 = arith.constant 0 : i32
    return %arg0, %c0_i32, %c0_i32_0 : i32, i32, i32
  }
  func.func @transform_4(%arg0: i32) -> (i32, i32, i32) {
    %c0_i32 = arith.constant 0 : i32
    %c0_i32_0 = arith.constant 0 : i32
    %c0_i32_1 = arith.constant 0 : i32
    return %arg0, %c0_i32, %c0_i32_0 : i32, i32, i32
  }
}

</mosaic_0001>

<llo_original>
// kernel: tpu_custom_call.1
$region0: #{tpu_custom_call.1}
  #allocation0 [shape = 'u32[]', space=smem, size = 0x4, offset = 0x4, fixed_abs, tag = 'smem constant byte address 0x4 - core index']
  #allocation1 [shape = 'u32[144,128]{1,0:T(1,128)}', space=vmem, size = 0x12000, scoped, tag = 'internal scratch']
  %s0 = inlined_call_operand.vmem [shape: bf16[128,36], index: 0, kind: input, shape index: {}]
  %s1 = inlined_call_operand.vmem [shape: bf16[36,128], index: 1, kind: input, shape index: {}]
  %s2 = inlined_call_operand.hbm [shape: f32[128,128], index: 2, kind: output, shape index: {0}]
  %s3 = inlined_call_operand.hbm [shape: f32[1,1,128], index: 3, kind: output, shape index: {1}]
  %s4 = inlined_call_operand.hbm [shape: f32[1,1,128], index: 4, kind: output, shape index: {2}]
  %5 = xla_tuple %s2, %s3, %s4
  %s6 = sld [smem:[#allocation0]]
  $region34: #{tpu_custom_call.1} parent=0
    _
  %s8 = ssub.s32 1, %s6
  %s9 = scalar_select 0, %s8, %s6
  $region1: #{tpu_custom_call.1} parent=0
    #allocation2 [shape = 'u8[65536]{0}', space=vmem, size = 0x10000, scoped, tag = 'output window, operand 0, single buffered']
    #allocation3 [shape = 's32[1]{0}', space=sflag, size = 0x4, scoped, tag = 'scoped memory for tpu_custom_call.1']
    #allocation4 [shape = 'u8[512]{0}', space=vmem, size = 0x400, scoped, tag = 'output window, operand 1, single buffered']
    #allocation5 [shape = 's32[1]{0}', space=sflag, size = 0x4, scoped, tag = 'scoped memory for tpu_custom_call.1']
    #allocation6 [shape = 'u8[512]{0}', space=vmem, size = 0x400, scoped, tag = 'output window, operand 2, single buffered']
    %10 = vsyncpa [#allocation3], 0
    %11 = vsyncpa [#allocation5], 0
    // Predicated region
    $region2: #{tpu_custom_call.1} parent=1 // pred_check
      _
    $region3: #{tpu_custom_call.1} parent=1 // pred_check_branch
      %13 = sbr.rel (0) target = $region5
    $region4: #{tpu_custom_call.1} parent=1 // pred_region
      _
    $region5: #{tpu_custom_call.1} parent=1 // pred_fallthru
      _
    // Predicated region
    $region6: #{tpu_custom_call.1} parent=1 // pred_check
      _
    $region7: #{tpu_custom_call.1} parent=1 // pred_check_branch
      %15 = sbr.rel (0) target = $region9
    $region8: #{tpu_custom_call.1} parent=1 // pred_region
      _
    $region9: #{tpu_custom_call.1} parent=1 // pred_fallthru
      _
    %v17 = vld [vmem:[%s0] sm:$0xf]
    %v18 = vld [vmem:[%s0 + $0x4] sm:$0xf]
    %v19 = vld [vmem:[%s0 + $0x8] sm:$0xf]
    %v20 = vld [vmem:[%s0 + $0xc] sm:$0xf]
    %v21 = vld [vmem:[%s0 + $0x10] sm:$0xf]
    %v22 = vld [vmem:[%s0 + $0x14] sm:$0xf]
    %v23 = vld [vmem:[%s0 + $0x18] sm:$0xf]
    %v24 = vld [vmem:[%s0 + $0x1c] sm:$0xf]
    %v25 = vld [vmem:[%s0 + $0x20] sm:$0xf]
    %v26 = vld [vmem:[%s0 + $0x24] sm:$0xf]
    %v27 = vld [vmem:[%s0 + $0x28] sm:$0xf]
    %v28 = vld [vmem:[%s0 + $0x2c] sm:$0xf]
    %v29 = vld [vmem:[%s0 + $0x30] sm:$0xf]
    %v30 = vld [vmem:[%s0 + $0x34] sm:$0xf]
    %v31 = vld [vmem:[%s0 + $0x38] sm:$0xf]
    %v32 = vld [vmem:[%s0 + $0x3c] sm:$0xf]
    %v33 = vld [vmem:[%s1] sm:$0xf]
    %v34 = vld [vmem:[%s1 + $0x4] sm:$0xf]
    %v35 = vld [vmem:[%s1 + $0x8] sm:$0xf]
    %v36 = vld [vmem:[%s1 + $0xc] sm:$0xf]
    %v37 = vld [vmem:[%s1 + $0x10] sm:$0x3]
    %v54 = vunpack.c.l.b16 %v17
    %v55 = vunpack.c.l.b16 %v18
    %v56 = vunpack.c.l.b16 %v19
    %v57 = vunpack.c.l.b16 %v20
    %v58 = vunpack.c.l.b16 %v21
    %v59 = vunpack.c.l.b16 %v22
    %v60 = vunpack.c.l.b16 %v23
    %v61 = vunpack.c.l.b16 %v24
    %v62 = vunpack.c.l.b16 %v25
    %v63 = vunpack.c.l.b16 %v26
    %v64 = vunpack.c.l.b16 %v27
    %v65 = vunpack.c.l.b16 %v28
    %v66 = vunpack.c.l.b16 %v29
    %v67 = vunpack.c.l.b16 %v30
    %v68 = vunpack.c.l.b16 %v31
    %v69 = vunpack.c.l.b16 %v32
    %v70 = vpack.c.b16 %v55, %v54
    %v71 = vpack.c.b16 %v57, %v56
    %v72 = vpack.c.b16 %v59, %v58
    %v73 = vpack.c.b16 %v61, %v60
    %v74 = vpack.c.b16 %v63, %v62
    %v75 = vpack.c.b16 %v65, %v64
    %v76 = vpack.c.b16 %v67, %v66
    %v77 = vpack.c.b16 %v69, %v68
    %v83 = vunpack.c.l.b16 %v33
    %v84 = vunpack.c.l.b16 %v34
    %v85 = vunpack.c.l.b16 %v35
    %v86 = vunpack.c.l.b16 %v36
    %v87 = vunpack.c.l.b16 %v37
    %v88 = vpack.c.b16 %v84, %v83
    %v89 = vpack.c.b16 %v86, %v85
    %v90 = vpack.c.b16 %v87, %v87
    %vm93 = vcmask 293888
    %v95 = vsel %vm93, %v70, 0
    %v98 = vsel %vm93, %v71, 0
    %v101 = vsel %vm93, %v72, 0
    %v104 = vsel %vm93, %v73, 0
    %v107 = vsel %vm93, %v74, 0
    %v110 = vsel %vm93, %v75, 0
    %v113 = vsel %vm93, %v76, 0
    %v116 = vsel %vm93, %v77, 0
    %vm118 = vcmask 1041408
    %v120 = vsel %vm118, %v90, 0
    %122 = vmatprep.subr.bf16.mxu0 0
    %123 = vmatpush1.bf16.msra.mxu0 0
    %124 = vmatprep.subr.bf16.mxu0 0
    %125 = vmatpush1.bf16.msra.mxu0 0
    %126 = vmatprep.subr.bf16.mxu0 0
    %127 = vmatpush1.bf16.msra.mxu0 0
    %128 = vmatprep.subr.bf16.mxu0 0
    %129 = vmatpush1.bf16.msra.mxu0 0
    %130 = vmatprep.subr.bf16.mxu0 0
    %131 = vmatpush1.bf16.msra.mxu0 0
    %132 = vmatprep.subr.bf16.mxu0 0
    %133 = vmatpush1.bf16.msra.mxu0 %v120
    %134 = vmatprep.subr.bf16.mxu0 0
    %135 = vmatpush1.bf16.msra.mxu0 %v89
    %136 = vmatprep.subr.bf16.mxu0 0
    %137 = vmatpush1.bf16.msra.mxu0 %v88
    %138 = vmatprep.subr.bf16.mxu0 0
    %139 = vmatpush2.bf16.msra.mxu0 0
    %140 = vmatprep.subr.bf16.mxu0 0
    %141 = vmatpush2.bf16.msra.mxu0 0
    %142 = vmatprep.subr.bf16.mxu0 0
    %143 = vmatpush2.bf16.msra.mxu0 0
    %144 = vmatprep.subr.bf16.mxu0 0
    %145 = vmatpush2.bf16.msra.mxu0 0
    %146 = vmatprep.subr.bf16.mxu0 0
    %147 = vmatpush2.bf16.msra.mxu0 0
    %148 = vmatprep.subr.bf16.mxu0 0
    %149 = vmatpush2.bf16.msra.mxu0 0
    %150 = vmatprep.subr.bf16.mxu0 0
    %151 = vmatpush2.bf16.msra.mxu0 0
    %152 = vmatprep.subr.bf16.mxu0 0
    %153 = vmatpush2.bf16.msra.mxu0 0
    %154 = vmatprep.mubr.bf16.mxu0 0
    %155 = vmatmul.mubr.bf16.gmra.mxu0 %v95
    %v156 = vpop.f32.mrf.mxu0
    %v157 = vadd.f32 0.0, %v156
    %v158 = vpop.f32.mrf.mxu0
    %v159 = vpop.f32.mrf.mxu0
    %v160 = vadd.f32 0.0, %v159
    %v161 = vpop.f32.mrf.mxu0
    %162 = vmatprep.mubr.bf16.mxu0 0
    %163 = vmatmul.mubr.bf16.gmra.mxu0 %v98
    %v164 = vpop.f32.mrf.mxu0
    %v165 = vadd.f32 0.0, %v164
    %v166 = vpop.f32.mrf.mxu0
    %v167 = vpop.f32.mrf.mxu0
    %v168 = vadd.f32 0.0, %v167
    %v169 = vpop.f32.mrf.mxu0
    %170 = vmatprep.mubr.bf16.mxu0 0
    %171 = vmatmul.mubr.bf16.gmra.mxu0 %v101
    %v172 = vpop.f32.mrf.mxu0
    %v173 = vadd.f32 0.0, %v172
    %v174 = vpop.f32.mrf.mxu0
    %v175 = vpop.f32.mrf.mxu0
    %v176 = vadd.f32 0.0, %v175
    %v177 = vpop.f32.mrf.mxu0
    %178 = vmatprep.mubr.bf16.mxu0 0
    %179 = vmatmul.mubr.bf16.gmra.mxu0 %v104
    %v180 = vpop.f32.mrf.mxu0
    %v181 = vadd.f32 0.0, %v180
    %v182 = vpop.f32.mrf.mxu0
    %v183 = vpop.f32.mrf.mxu0
    %v184 = vadd.f32 0.0, %v183
    %v185 = vpop.f32.mrf.mxu0
    %186 = vmatprep.mubr.bf16.mxu0 0
    %187 = vmatmul.mubr.bf16.gmra.mxu0 %v107
    %v188 = vpop.f32.mrf.mxu0
    %v189 = vadd.f32 0.0, %v188
    %v190 = vpop.f32.mrf.mxu0
    %v191 = vpop.f32.mrf.mxu0
    %v192 = vadd.f32 0.0, %v191
    %v193 = vpop.f32.mrf.mxu0
    %194 = vmatprep.mubr.bf16.mxu0 0
    %195 = vmatmul.mubr.bf16.gmra.mxu0 %v110
    %v196 = vpop.f32.mrf.mxu0
    %v197 = vadd.f32 0.0, %v196
    %v198 = vpop.f32.mrf.mxu0
    %v199 = vpop.f32.mrf.mxu0
    %v200 = vadd.f32 0.0, %v199
    %v201 = vpop.f32.mrf.mxu0
    %202 = vmatprep.mubr.bf16.mxu0 0
    %203 = vmatmul.mubr.bf16.gmra.mxu0 %v113
    %v204 = vpop.f32.mrf.mxu0
    %v205 = vadd.f32 0.0, %v204
    %v206 = vpop.f32.mrf.mxu0
    %v207 = vpop.f32.mrf.mxu0
    %v208 = vadd.f32 0.0, %v207
    %v209 = vpop.f32.mrf.mxu0
    %210 = vmatprep.mubr.bf16.mxu0 0
    %211 = vmatmul.mubr.bf16.gmra.mxu0 %v116
    %v212 = vpop.f32.mrf.mxu0
    %v213 = vadd.f32 0.0, %v212
    %v214 = vpop.f32.mrf.mxu0
    %v215 = vpop.f32.mrf.mxu0
    %v216 = vadd.f32 0.0, %v215
    %v217 = vpop.f32.mrf.mxu0
    %218 = vdwg.mxu0
    %219 = vst [vmem:[#allocation2] sm:$0xff] %v157
    %220 = vst [vmem:[#allocation2 + $0x8] sm:$0xff] %v160
    %221 = vst [vmem:[#allocation2 + $0x10] sm:$0xff] %v165
    %222 = vst [vmem:[#allocation2 + $0x18] sm:$0xff] %v168
    %223 = vst [vmem:[#allocation2 + $0x20] sm:$0xff] %v173
    %224 = vst [vmem:[#allocation2 + $0x28] sm:$0xff] %v176
    %225 = vst [vmem:[#allocation2 + $0x30] sm:$0xff] %v181
    %226 = vst [vmem:[#allocation2 + $0x38] sm:$0xff] %v184
    %227 = vst [vmem:[#allocation2 + $0x40] sm:$0xff] %v189
    %228 = vst [vmem:[#allocation2 + $0x48] sm:$0xff] %v192
    %229 = vst [vmem:[#allocation2 + $0x50] sm:$0xff] %v197
    %230 = vst [vmem:[#allocation2 + $0x58] sm:$0xff] %v200
    %231 = vst [vmem:[#allocation2 + $0x60] sm:$0xff] %v205
    %232 = vst [vmem:[#allocation2 + $0x68] sm:$0xff] %v208
    %233 = vst [vmem:[#allocation2 + $0x70] sm:$0xff] %v213
    %234 = vst [vmem:[#allocation2 + $0x78] sm:$0xff] %v216
    %v235 = vadd.f32 %v157, %v160
    %v236 = vadd.f32 %v235, %v165
    %v237 = vadd.f32 %v236, %v168
    %v238 = vadd.f32 %v237, %v173
    %v239 = vadd.f32 %v238, %v176
    %v240 = vadd.f32 %v239, %v181
    %v241 = vadd.f32 %v240, %v184
    %v242 = vadd.f32 %v241, %v189
    %v243 = vadd.f32 %v242, %v192
    %v244 = vadd.f32 %v243, %v197
    %v245 = vadd.f32 %v244, %v200
    %v246 = vadd.f32 %v245, %v205
    %v247 = vadd.f32 %v246, %v208
    %v248 = vadd.f32 %v247, %v213
    %v249 = vadd.f32 %v248, %v216
    %v250 = vrot.slane %v249, 4
    %v251 = vadd.f32 %v249, %v250
    %v252 = vrot.slane %v251, 2
    %v253 = vadd.f32 %v251, %v252
    %v254 = vrot.slane %v253, 1
    %v255 = vadd.f32 %v253, %v254
    %256 = vst [vmem:[#allocation4] sm:$0x1] %v255
    %v257 = vmul.f32 %v157, %v157
    %v258 = vmul.f32 %v160, %v160
    %v259 = vmul.f32 %v165, %v165
    %v260 = vmul.f32 %v168, %v168
    %v261 = vmul.f32 %v173, %v173
    %v262 = vmul.f32 %v176, %v176
    %v263 = vmul.f32 %v181, %v181
    %v264 = vmul.f32 %v184, %v184
    %v265 = vmul.f32 %v189, %v189
    %v266 = vmul.f32 %v192, %v192
    %v267 = vmul.f32 %v197, %v197
    %v268 = vmul.f32 %v200, %v200
    %v269 = vmul.f32 %v205, %v205
    %v270 = vmul.f32 %v208, %v208
    %v271 = vmul.f32 %v213, %v213
    %v272 = vmul.f32 %v216, %v216
    %v273 = vadd.f32 %v257, %v258
    %v274 = vadd.f32 %v273, %v259
    %v275 = vadd.f32 %v274, %v260
    %v276 = vadd.f32 %v275, %v261
    %v277 = vadd.f32 %v276, %v262
    %v278 = vadd.f32 %v277, %v263
    %v279 = vadd.f32 %v278, %v264
    %v280 = vadd.f32 %v279, %v265
    %v281 = vadd.f32 %v280, %v266
    %v282 = vadd.f32 %v281, %v267
    %v283 = vadd.f32 %v282, %v268
    %v284 = vadd.f32 %v283, %v269
    %v285 = vadd.f32 %v284, %v270
    %v286 = vadd.f32 %v285, %v271
    %v287 = vadd.f32 %v286, %v272
    %v288 = vrot.slane %v287, 4
    %v289 = vadd.f32 %v287, %v288
    %v290 = vrot.slane %v289, 2
    %v291 = vadd.f32 %v289, %v290
    %v292 = vrot.slane %v291, 1
    %v293 = vadd.f32 %v291, %v292
    %294 = vst [vmem:[#allocation6] sm:$0x1] %v293
    // Predicated region
    $region10: #{tpu_custom_call.1} parent=1 // pred_check
      _
    $region11: #{tpu_custom_call.1} parent=1 // pred_check_branch
      %296 = sbr.rel (0) target = $region13
    $region12: #{tpu_custom_call.1} parent=1 // pred_region
      %s298 = ssub.s32 2048, 2048
      %299 = vsyncadd [#allocation3], %s298
      %s300 = sshll.u32 [#allocation2], 4
      %s301 = int_to_ptr.vmem [resolvable:$true] %s300
      %306 = dma.vmem_to_hbm [thread:$0]  %s301, 2048, %s2, [#allocation3], 128, 128, 8
    $region13: #{tpu_custom_call.1} parent=1 // pred_fallthru
      _
    // Predicated region
    $region14: #{tpu_custom_call.1} parent=1 // pred_check
      _
    $region15: #{tpu_custom_call.1} parent=1 // pred_check_branch
      %308 = sbr.rel (0) target = $region17
    $region16: #{tpu_custom_call.1} parent=1 // pred_region
      %s310 = ssub.s32 16, 16
      %311 = vsyncadd [#allocation5], %s310
      %s313 = sshll.u32 [#allocation4], 4
      %s314 = int_to_ptr.vmem [resolvable:$true] %s313
      %316 = dma.vmem_to_hbm [thread:$0]  %s314, 16, %s3, [#allocation5]
    $region17: #{tpu_custom_call.1} parent=1 // pred_fallthru
      _
    // Predicated region
    $region18: #{tpu_custom_call.1} parent=1 // pred_check
      _
    $region19: #{tpu_custom_call.1} parent=1 // pred_check_branch
      %318 = sbr.rel (0) target = $region21
    $region20: #{tpu_custom_call.1} parent=1 // pred_region
      %s320 = ssub.s32 16, 16
      %321 = vsyncadd [#allocation5], %s320
      %s323 = sshll.u32 [#allocation6], 4
      %s324 = int_to_ptr.vmem [resolvable:$true] %s323
      %326 = dma.vmem_to_hbm [thread:$0]  %s324, 16, %s4, [#allocation5]
    $region21: #{tpu_custom_call.1} parent=1 // pred_fallthru
      _
    // Predicated region
    $region22: #{tpu_custom_call.1} parent=1 // pred_check
      _
    $region23: #{tpu_custom_call.1} parent=1 // pred_check_branch
      %328 = sbr.rel (0) target = $region25
    $region24: #{tpu_custom_call.1} parent=1 // pred_region
      %329 = dma.done [#allocation3], 2048
    $region25: #{tpu_custom_call.1} parent=1 // pred_fallthru
      _
    // Predicated region
    $region26: #{tpu_custom_call.1} parent=1 // pred_check
      _
    $region27: #{tpu_custom_call.1} parent=1 // pred_check_branch
      %331 = sbr.rel (0) target = $region29
    $region28: #{tpu_custom_call.1} parent=1 // pred_region
      %332 = dma.done [#allocation5], 16
    $region29: #{tpu_custom_call.1} parent=1 // pred_fallthru
      _
    // Predicated region
    $region30: #{tpu_custom_call.1} parent=1 // pred_check
      _
    $region31: #{tpu_custom_call.1} parent=1 // pred_check_branch
      %334 = sbr.rel (0) target = $region33
    $region32: #{tpu_custom_call.1} parent=1 // pred_region
      %335 = dma.done [#allocation5], 16
    $region33: #{tpu_custom_call.1} parent=1 // pred_fallthru
      _
    %336 = vsyncpa [#allocation3], 1
    %337 = vsyncpa [#allocation5], 1

</llo_original>
